<compile_context>
chip_gen: v7x
topology: tpu7x:2x2x1
jax: 0.10.0
libtpu: 0.0.40
codegen_flags: <defaults>
</compile_context>

<pallas_src>
import functools

import jax
import jax.numpy as jnp
from jax.experimental import pallas as pl
from jax.experimental.pallas import tpu as pltpu


def _conv_same_kernel(x_ref, w_ref, b_ref, o_ref, *, kh_size, h_out):
    """One batch element per grid step.

    x_ref: (Hp_pad, Wp*Cin)      zero-padded input rows for this batch element
    w_ref: (KH, Wp*Cin, W*Cout)  banded weight (W-shift + Cin contraction folded in)
    b_ref: (1, W*Cout)           bias tiled to the output column layout
    o_ref: (H,  W*Cout)          lane-dense output slab for this batch element
    """
    acc = jnp.zeros(o_ref.shape, jnp.float32)
    for kh in range(kh_size):                      # static, unrolled: KH MXU pushes total
        acc = acc + jnp.dot(x_ref[kh:kh + h_out, :], w_ref[kh],
                            preferred_element_type=jnp.float32)
    o_ref[...] = (acc + b_ref[...]).astype(o_ref.dtype)


def conv2d_same(x_nchw, weight_oihw, bias):
    """PyTorch-semantics Conv2d(kernel_size=k, padding=(k-1)//2, bias=True) forward."""
    N, Cin, H, W = x_nchw.shape
    Cout, Cin_w, KH, KW = weight_oihw.shape
    assert Cin == Cin_w
    assert KH == KW and KH % 2 == 1, "same-padding path assumes odd square kernels"
    assert H % 8 == 0, "output row tile must be a sublane multiple"
    pad = (KH - 1) // 2
    Hp, Wp = H + 2 * pad, W + 2 * pad
    hp_pad = ((Hp + 7) // 8) * 8          # per-batch padded rows, rounded to sublane multiple

    # --- lane-dense input slab: (N*hp_pad, Wp*Cin), row = n*hp_pad + h', col = wp*Cin + cin
    x_nhwc = jnp.transpose(x_nchw, (0, 2, 3, 1)).astype(jnp.float32)
    xp = jnp.pad(x_nhwc, ((0, 0), (pad, pad + (hp_pad - Hp)), (pad, pad), (0, 0)))
    x_slab = xp.reshape(N * hp_pad, Wp * Cin)

    # --- banded weight: big_w[kh, wp*Cin+cin, w*Cout+cout] = W[cout, cin, kh, kw], wp = w+kw
    w_hwio = jnp.transpose(weight_oihw, (2, 3, 1, 0)).astype(jnp.float32)   # (KH,KW,Cin,Cout)
    onehot = (jnp.arange(Wp)[None, None, :] ==
              (jnp.arange(W)[None, :, None] + jnp.arange(KW)[:, None, None])
              ).astype(jnp.float32)                                          # (KW, W, Wp)
    big_w = jnp.einsum('kwp,akio->apiwo', onehot, w_hwio).reshape(KH, Wp * Cin, W * Cout)

    # --- bias tiled to the output column layout (col = w*Cout + cout)
    b_slab = jnp.tile(bias.astype(jnp.float32), W).reshape(1, W * Cout)

    kernel = functools.partial(_conv_same_kernel, kh_size=KH, h_out=H)

    flops = 2 * N * H * W * Cout * Cin * KH * KW
    bytes_accessed = 4 * (x_slab.size + big_w.size + b_slab.size + N * H * W * Cout)

    out_slab = pl.pallas_call(
        kernel,
        out_shape=jax.ShapeDtypeStruct((N * H, W * Cout), jnp.float32),
        grid=(N,),
        in_specs=[
            pl.BlockSpec((hp_pad, Wp * Cin), lambda n: (n, 0)),
            pl.BlockSpec((KH, Wp * Cin, W * Cout), lambda n: (0, 0, 0)),
            pl.BlockSpec((1, W * Cout), lambda n: (0, 0)),
        ],
        out_specs=pl.BlockSpec((H, W * Cout), lambda n: (n, 0)),
        compiler_params=pltpu.CompilerParams(
            dimension_semantics=("parallel",),          # batch axis -> both TCs on v7x
            vmem_limit_bytes=32 * 1024 * 1024,
        ),
        cost_estimate=pl.CostEstimate(flops=flops, transcendentals=0,
                                      bytes_accessed=bytes_accessed),
    )(x_slab, big_w, b_slab)

    # (N*H, W*Cout) -> NCHW
    return jnp.transpose(out_slab.reshape(N, H, W, Cout), (0, 3, 1, 2))


def _reference(x, w, b):
    """Plain-JAX reference mirroring nn.Conv2d(kernel_size=k, padding=(k-1)//2)."""
    KH = w.shape[2]
    pad = (KH - 1) // 2
    y = jax.lax.conv_general_dilated(
        x, w, window_strides=(1, 1),
        padding=[(pad, pad), (pad, pad)],
        dimension_numbers=('NCHW', 'OIHW', 'NCHW'))
    return y + b[None, :, None, None]


if __name__ == "__main__":
    key = jax.random.PRNGKey(0)
    k_x, k_w, k_b = jax.random.split(key, 3)

    # Small shapes consistent with the module: myConv2d(4, 8, kernel_size=3)
    N, Cin, Cout, H, W = 2, 4, 8, 16, 16
    KH = KW = 3

    x = jax.random.normal(k_x, (N, Cin, H, W), dtype=jnp.float32)
    weight = jax.random.normal(k_w, (Cout, Cin, KH, KW), dtype=jnp.float32) * 0.1
    bias = jax.random.normal(k_b, (Cout,), dtype=jnp.float32) * 0.1

    out = conv2d_same(x, weight, bias)
    out = jax.block_until_ready(out)

    ref = _reference(x, weight, bias)
    assert out.shape == (N, Cout, H, W)
    assert jnp.allclose(out, ref, atol=1e-4, rtol=1e-4), \
        f"max abs diff = {jnp.max(jnp.abs(out - ref))}"

    print("KERNEL_OK")
</pallas_src>

<mosaic_0001>
module attributes {stable_mosaic.version = 11 : i64} {
  func.func @_conv_same_kernel(%arg0: i32, %arg1: memref<24x72xf32, #tpu.memory_space<vmem>>, %arg2: memref<3x72x128xf32, #tpu.memory_space<vmem>>, %arg3: memref<1x128xf32, #tpu.memory_space<vmem>>, %arg4: memref<16x128xf32, #tpu.memory_space<vmem>>) attributes {dimension_semantics = [#tpu.dimension_semantics<parallel>], iteration_bounds = array<i64: 2>, scalar_prefetch = 0 : i64, scratch_operands = 0 : i64, tpu.core_type = #tpu.core_type<tc>, window_params = [{transform_indices = @transform_0, window_bounds = array<i64: 24, 72>}, {pipeline_mode = #tpu.pipeline_mode<synchronous>, transform_indices = @transform_1, window_bounds = array<i64: 3, 72, 128>}, {pipeline_mode = #tpu.pipeline_mode<synchronous>, transform_indices = @transform_2, window_bounds = array<i64: 1, 128>}, {transform_indices = @transform_3, window_bounds = array<i64: 16, 128>}]} {
    %cst = arith.constant 0.000000e+00 : f32
    %0 = vector.broadcast %cst : f32 to vector<16x128xf32>
    %c0 = arith.constant 0 : index
    %c0_0 = arith.constant 0 : index
    %1 = vector.load %arg1[%c0, %c0_0] : memref<24x72xf32, #tpu.memory_space<vmem>>, vector<16x72xf32>
    %c0_1 = arith.constant 0 : index
    %c0_2 = arith.constant 0 : index
    %c0_3 = arith.constant 0 : index
    %2 = vector.load %arg2[%c0_1, %c0_2, %c0_3] : memref<3x72x128xf32, #tpu.memory_space<vmem>>, vector<1x72x128xf32>
    %3 = vector.shape_cast %2 : vector<1x72x128xf32> to vector<72x128xf32>
    %cst_4 = arith.constant dense<0.000000e+00> : vector<16x128xf32>
    %4 = tpu.matmul %1, %3, %cst_4 {dimension_numbers = #tpu.dot_dimension_numbers<[1], [0], [0], [1], [0, 0, 1, 1], [], []>} : vector<16x72xf32>, vector<72x128xf32>, vector<16x128xf32> -> vector<16x128xf32>
    %5 = arith.addf %0, %4 : vector<16x128xf32>
    %c1 = arith.constant 1 : index
    %c0_5 = arith.constant 0 : index
    %6 = vector.load %arg1[%c1, %c0_5] : memref<24x72xf32, #tpu.memory_space<vmem>>, vector<16x72xf32>
    %c1_6 = arith.constant 1 : index
    %c0_7 = arith.constant 0 : index
    %c0_8 = arith.constant 0 : index
    %7 = vector.load %arg2[%c1_6, %c0_7, %c0_8] : memref<3x72x128xf32, #tpu.memory_space<vmem>>, vector<1x72x128xf32>
    %8 = vector.shape_cast %7 : vector<1x72x128xf32> to vector<72x128xf32>
    %cst_9 = arith.constant dense<0.000000e+00> : vector<16x128xf32>
    %9 = tpu.matmul %6, %8, %cst_9 {dimension_numbers = #tpu.dot_dimension_numbers<[1], [0], [0], [1], [0, 0, 1, 1], [], []>} : vector<16x72xf32>, vector<72x128xf32>, vector<16x128xf32> -> vector<16x128xf32>
    %10 = arith.addf %5, %9 : vector<16x128xf32>
    %c2 = arith.constant 2 : index
    %c0_10 = arith.constant 0 : index
    %11 = vector.load %arg1[%c2, %c0_10] : memref<24x72xf32, #tpu.memory_space<vmem>>, vector<16x72xf32>
    %c2_11 = arith.constant 2 : index
    %c0_12 = arith.constant 0 : index
    %c0_13 = arith.constant 0 : index
    %12 = vector.load %arg2[%c2_11, %c0_12, %c0_13] : memref<3x72x128xf32, #tpu.memory_space<vmem>>, vector<1x72x128xf32>
    %13 = vector.shape_cast %12 : vector<1x72x128xf32> to vector<72x128xf32>
    %cst_14 = arith.constant dense<0.000000e+00> : vector<16x128xf32>
    %14 = tpu.matmul %11, %13, %cst_14 {dimension_numbers = #tpu.dot_dimension_numbers<[1], [0], [0], [1], [0, 0, 1, 1], [], []>} : vector<16x72xf32>, vector<72x128xf32>, vector<16x128xf32> -> vector<16x128xf32>
    %15 = arith.addf %10, %14 : vector<16x128xf32>
    %c0_15 = arith.constant 0 : index
    %c0_16 = arith.constant 0 : index
    %16 = vector.load %arg3[%c0_15, %c0_16] : memref<1x128xf32, #tpu.memory_space<vmem>>, vector<1x128xf32>
    %17 = vector.broadcast %16 : vector<1x128xf32> to vector<16x128xf32>
    %18 = arith.addf %15, %17 : vector<16x128xf32>
    %c0_17 = arith.constant 0 : index
    %c0_18 = arith.constant 0 : index
    %19 = vector.load %arg4[%c0_17, %c0_18] : memref<16x128xf32, #tpu.memory_space<vmem>>, vector<16x128xf32>
    tpu.vector_store %arg4[%c0_17, %c0_18], %18 {strides = array<i32>} : memref<16x128xf32, #tpu.memory_space<vmem>>, vector<16x128xf32>,
    return
  }
  func.func @transform_0(%arg0: i32) -> (i32, i32) {
    %c0_i32 = arith.constant 0 : i32
    %c0_i32_0 = arith.constant 0 : i32
    return %arg0, %c0_i32 : i32, i32
  }
  func.func @transform_1(%arg0: i32) -> (i32, i32, i32) {
    %c0_i32 = arith.constant 0 : i32
    %c0_i32_0 = arith.constant 0 : i32
    %c0_i32_1 = arith.constant 0 : i32
    %c0_i32_2 = arith.constant 0 : i32
    return %c0_i32, %c0_i32_0, %c0_i32_1 : i32, i32, i32
  }
  func.func @transform_2(%arg0: i32) -> (i32, i32) {
    %c0_i32 = arith.constant 0 : i32
    %c0_i32_0 = arith.constant 0 : i32
    %c0_i32_1 = arith.constant 0 : i32
    return %c0_i32, %c0_i32_0 : i32, i32
  }
  func.func @transform_3(%arg0: i32) -> (i32, i32) {
    %c0_i32 = arith.constant 0 : i32
    %c0_i32_0 = arith.constant 0 : i32
    return %arg0, %c0_i32 : i32, i32
  }
}

</mosaic_0001>

<llo_original>
// kernel: tpu_custom_call.1
$region0: #{tpu_custom_call.1}
  #allocation0 [shape = 'u32[]', space=smem, size = 0x4, offset = 0x4, fixed_abs, tag = 'smem constant byte address 0x4 - core index']
  #allocation1 [shape = 'u32[144,128]{1,0:T(1,128)}', space=vmem, size = 0x12000, scoped, tag = 'internal scratch']
  %s0 = inlined_call_operand.hbm [shape: f32[48,72], index: 0, kind: input, shape index: {}]
  %s1 = inlined_call_operand.hbm [shape: f32[3,72,128], index: 1, kind: input, shape index: {}]
  %s2 = inlined_call_operand.vmem [shape: f32[1,128], index: 2, kind: input, shape index: {}]
  %s3 = inlined_call_operand.hbm [shape: f32[32,128], index: 3, kind: output, shape index: {}]
  %s4 = sld [smem:[#allocation0]]
  $region53: #{tpu_custom_call.1} parent=0
    _
  %s6 = ssub.s32 1, %s4
  %s7 = scalar_select 0, %s6, %s4
  $region1: #{tpu_custom_call.1} parent=0
    #allocation2 [shape = 'u8[24576]{0}', space=vmem, size = 0x6000, scoped, tag = 'input window, operand 0']
    #allocation3 [shape = 's32[2]{0}', space=sflag, size = 0x8, scoped, tag = 'scoped memory for tpu_custom_call.1']
    #allocation4 [shape = 's32[2]{0}', space=sflag, size = 0x8, scoped, tag = 'scoped memory for tpu_custom_call.1']
    #allocation5 [shape = 'u8[110592]{0}', space=vmem, size = 0x1b000, scoped, tag = 'input window, operand 1, single buffered']
    #allocation6 [shape = 's32[1]{0}', space=sflag, size = 0x4, scoped, tag = 'scoped memory for tpu_custom_call.1']
    #allocation7 [shape = 'u8[16384]{0}', space=vmem, size = 0x4000, scoped, tag = 'output window, operand 0']
    %8 = vsyncpa [#allocation3], 0
    %s9 = scalar_lea.sflag [#allocation3], 1
    %10 = vsyncpa %s9, 0
    %11 = vsyncpa [#allocation6], 0
    %12 = vsyncpa [#allocation4], 0
    %s13 = scalar_lea.sflag [#allocation4], 1
    %14 = vsyncpa %s13, 0
    loop: start=0, step=1, limit=4
    $region2: #{tpu_custom_call.1} parent=1 // loop_pre_header
      _
    $region3: #{tpu_custom_call.1} parent=1 // loop_header
      %s16 = sphi 0, %s20
      %p17 = scmp.ge.s32.totalorder %s16, 4
      %s26 = sphi 0, %s28
      %s29 = sphi 0, %s26
      %s30 = sphi 0, %s29
      %s46 = sphi 0, %s30
      %s50 = sphi 0, %s50
      %s52 = sphi 0, %s50
      %s53 = sphi 0, %s52
      %s67 = sphi 0, %s53
      %s71 = sphi 0, %s71
      %s73 = sphi 0, %s71
      %s74 = sphi 0, %s73
      %s88 = sphi 0, %s74
      %s94 = sphi 0, %s96
      %s97 = sphi 0, %s94
      %s98 = sphi 0, %s97
      %s114 = sphi 0, %s98
    $region4: #{tpu_custom_call.1} parent=1 // loop_header_branch
      %19 = sbr.rel (%p17) target = $region8
    $region5: #{tpu_custom_call.1} parent=1 // loop_body
      %s21 = ssub.s32 %s16, 1
      %s22 = ssub.s32 %s16, 2
      %s23 = sadd.s32 %s16, 1
      %s24 = ssub.s32 %s16, %s23
      %p25 = scmp.eq.s32.totalorder %s24, 0
      %s27 = sadd.s32 %s26, 1
      %s28 = scalar_select %p25, %s26, %s27
      %p31 = pneg %p25
      %p32 = scmp.eq.s32.totalorder %s16, 1
      %p33 = por %p31, %p32
      %p34 = scmp.ne.s32.totalorder %s26, %s29
      %p35 = scmp.eq.s32.totalorder %s16, 0
      %p36 = por %p34, %p35
      %p37 = scmp.ne.s32.totalorder %s26, %s29
      %p38 = scmp.eq.s32.totalorder %s21, 1
      %p39 = por %p37, %p38
      %p40 = scmp.ne.s32.totalorder %s29, %s30
      %p41 = scmp.eq.s32.totalorder %s21, 0
      %p42 = por %p40, %p41
      %p43 = scmp.ne.s32.totalorder %s29, %s30
      %p44 = scmp.eq.s32.totalorder %s22, 1
      %p45 = por %p43, %p44
      %p47 = scmp.ne.s32.totalorder %s30, %s46
      %p48 = scmp.eq.s32.totalorder %s22, 0
      %p49 = por %p47, %p48
      %s51 = sadd.s32 %s50, 1
      %p54 = scmp.eq.s32.totalorder %s16, 1
      %p55 = scmp.ne.s32.totalorder %s50, %s52
      %p56 = scmp.eq.s32.totalorder %s16, 0
      %p57 = por %p55, %p56
      %p58 = scmp.ne.s32.totalorder %s50, %s52
      %p59 = scmp.eq.s32.totalorder %s21, 1
      %p60 = por %p58, %p59
      %p61 = scmp.ne.s32.totalorder %s52, %s53
      %p62 = scmp.eq.s32.totalorder %s21, 0
      %p63 = por %p61, %p62
      %p64 = scmp.ne.s32.totalorder %s52, %s53
      %p65 = scmp.eq.s32.totalorder %s22, 1
      %p66 = por %p64, %p65
      %p68 = scmp.ne.s32.totalorder %s53, %s67
      %p69 = scmp.eq.s32.totalorder %s22, 0
      %p70 = por %p68, %p69
      %s72 = sadd.s32 %s71, 1
      %p75 = scmp.eq.s32.totalorder %s16, 1
      %p76 = scmp.ne.s32.totalorder %s71, %s73
      %p77 = scmp.eq.s32.totalorder %s16, 0
      %p78 = por %p76, %p77
      %p79 = scmp.ne.s32.totalorder %s71, %s73
      %p80 = scmp.eq.s32.totalorder %s21, 1
      %p81 = por %p79, %p80
      %p82 = scmp.ne.s32.totalorder %s73, %s74
      %p83 = scmp.eq.s32.totalorder %s21, 0
      %p84 = por %p82, %p83
      %p85 = scmp.ne.s32.totalorder %s73, %s74
      %p86 = scmp.eq.s32.totalorder %s22, 1
      %p87 = por %p85, %p86
      %p89 = scmp.ne.s32.totalorder %s74, %s88
      %p90 = scmp.eq.s32.totalorder %s22, 0
      %p91 = por %p89, %p90
      %s92 = ssub.s32 %s16, %s23
      %p93 = scmp.eq.s32.totalorder %s92, 0
      %s95 = sadd.s32 %s94, 1
      %s96 = scalar_select %p93, %s94, %s95
      %p99 = pneg %p93
      %p100 = scmp.eq.s32.totalorder %s16, 1
      %p101 = por %p99, %p100
      %p102 = scmp.ne.s32.totalorder %s94, %s97
      %p103 = scmp.eq.s32.totalorder %s16, 0
      %p104 = por %p102, %p103
      %p105 = scmp.ne.s32.totalorder %s94, %s97
      %p106 = scmp.eq.s32.totalorder %s21, 1
      %p107 = por %p105, %p106
      %p108 = scmp.ne.s32.totalorder %s97, %s98
      %p109 = scmp.eq.s32.totalorder %s21, 0
      %p110 = por %p108, %p109
      %p111 = scmp.ne.s32.totalorder %s97, %s98
      %p112 = scmp.eq.s32.totalorder %s22, 1
      %p113 = por %p111, %p112
      %p115 = scmp.ne.s32.totalorder %s98, %s114
      %p116 = scmp.eq.s32.totalorder %s22, 0
      %p117 = por %p115, %p116
      %p118 = scmp.le.s32.totalorder 1, %s16
      %p119 = scmp.lt.s32.totalorder %s16, 3
      %p120 = pnand %p118, %p119
      %p121 = pneg %p120
      // Predicated region
      $region9: #{tpu_custom_call.1} parent=5 // pred_check
        _
      $region10: #{tpu_custom_call.1} parent=5 // pred_check_branch
        %123 = sbr.rel (%p120) target = $region12
      $region11: #{tpu_custom_call.1} parent=5 // pred_region
        %s124 = ssub.s32 %s16, 1
        // Predicated region
        $region13: #{tpu_custom_call.1} parent=11 // pred_check
          %p125 = pneg %p63
        $region14: #{tpu_custom_call.1} parent=11 // pred_check_branch
          %127 = sbr.rel (%p125) target = $region16
        $region15: #{tpu_custom_call.1} parent=11 // pred_region
          %s129 = ssub.s32 3456, 3456
          %130 = vsyncadd [#allocation6], %s129
          %s131 = sshll.u32 [#allocation5], 4
          %s132 = int_to_ptr.vmem [resolvable:$true] %s131
          %137 = dma.hbm_to_vmem [thread:$0]  %s1, 3456, %s132, [#allocation6], 128, 128, 8
        $region16: #{tpu_custom_call.1} parent=11 // pred_fallthru
          _
        // Predicated region
        $region17: #{tpu_custom_call.1} parent=11 // pred_check
          %p138 = pneg %p84
        $region18: #{tpu_custom_call.1} parent=11 // pred_check_branch
          %140 = sbr.rel (%p138) target = $region20
        $region19: #{tpu_custom_call.1} parent=11 // pred_region
          _
        $region20: #{tpu_custom_call.1} parent=11 // pred_fallthru
          _
      $region12: #{tpu_custom_call.1} parent=5 // pred_fallthru
        _
      %p141 = scmp.lt.s32.totalorder %s16, 2
      // Predicated region
      $region21: #{tpu_custom_call.1} parent=5 // pred_check
        %p142 = pneg %p141
      $region22: #{tpu_custom_call.1} parent=5 // pred_check_branch
        %144 = sbr.rel (%p142) target = $region24
      $region23: #{tpu_custom_call.1} parent=5 // pred_region
        // Predicated region
        $region25: #{tpu_custom_call.1} parent=23 // pred_check
          %p145 = pneg %p36
        $region26: #{tpu_custom_call.1} parent=23 // pred_check_branch
          %147 = sbr.rel (%p145) target = $region28
        $region27: #{tpu_custom_call.1} parent=23 // pred_region
          %s148 = sand.u32 %s26, 1
          %s149 = scalar_lea.sflag [#allocation3], %s148
          %s150 = sand.u32 %s26, 1
          %s151 = smul.addr %s150, 24
          %s152 = scalar_lea.vmem [#allocation2], %s151
          %s153 = smul.u32 3, %s16
          %s155 = ssub.s32 384, 384
          %156 = vsyncadd %s149, %s155
          %s157 = smul.addr %s153, 128
          %s158 = scalar_lea.hbm %s0, %s157
          %s159 = sshll.u32 %s152, 4
          %s160 = int_to_ptr.vmem [resolvable:$true] %s159
          %165 = dma.hbm_to_vmem [thread:$0]  %s158, 384, %s160, %s149, 128, 128, 8
        $region28: #{tpu_custom_call.1} parent=23 // pred_fallthru
          _
      $region24: #{tpu_custom_call.1} parent=5 // pred_fallthru
        _
      %p166 = scmp.le.s32.totalorder 1, %s16
      %p167 = scmp.lt.s32.totalorder %s16, 3
      %p168 = pnand %p166, %p167
      %p169 = pneg %p168
      // Predicated region
      $region29: #{tpu_custom_call.1} parent=5 // pred_check
        _
      $region30: #{tpu_custom_call.1} parent=5 // pred_check_branch
        %171 = sbr.rel (%p168) target = $region32
      $region31: #{tpu_custom_call.1} parent=5 // pred_region
        %s172 = ssub.s32 %s16, 1
        %s173 = sand.u32 %s29, 1
        %s174 = scalar_lea.sflag [#allocation3], %s173
        %s175 = sand.u32 %s29, 1
        %s176 = smul.addr %s175, 24
        %s177 = scalar_lea.vmem [#allocation2], %s176
        // Predicated region
        $region33: #{tpu_custom_call.1} parent=31 // pred_check
          %p178 = pneg %p42
        $region34: #{tpu_custom_call.1} parent=31 // pred_check_branch
          %180 = sbr.rel (%p178) target = $region36
        $region35: #{tpu_custom_call.1} parent=31 // pred_region
          %181 = dma.done %s174, 384
        $region36: #{tpu_custom_call.1} parent=31 // pred_fallthru
          _
        // Predicated region
        $region37: #{tpu_custom_call.1} parent=31 // pred_check
          %p182 = pneg %p63
        $region38: #{tpu_custom_call.1} parent=31 // pred_check_branch
          %184 = sbr.rel (%p182) target = $region40
        $region39: #{tpu_custom_call.1} parent=31 // pred_region
          %185 = dma.done [#allocation6], 3456
        $region40: #{tpu_custom_call.1} parent=31 // pred_fallthru
          _
        %s186 = sand.u32 %s29, 1
        %s187 = scalar_lea.sflag [#allocation3], %s186
        %s188 = sand.u32 %s29, 1
        %s189 = smul.addr %s188, 24
        %s190 = scalar_lea.vmem [#allocation2], %s189
        %p191 = pneg %p42
        %p192 = pneg %p39
        %p193 = pneg %p63
        %p194 = pneg %p60
        %p195 = pneg %p84
        %p196 = pneg %p81
        %p197 = pneg %p110
        %p198 = pneg %p107
        %s199 = sand.u32 %s97, 1
        %s200 = scalar_lea.sflag [#allocation4], %s199
        %s201 = sand.u32 %s97, 1
        %s202 = smul.addr %s201, 16
        %s203 = scalar_lea.vmem [#allocation7], %s202
        %s204 = smul.u32 3, %s21
        %s205 = smul.u32 2, %s21
        %v206 = vld [vmem:[%s177] sm:$0xff]
        %v207 = vld [vmem:[%s177 + $0x8] sm:$0xff]
        %v208 = vld [vmem:[#allocation5] sm:$0xff]
        %v209 = vld [vmem:[#allocation5 + $0x8] sm:$0xff]
        %v210 = vld [vmem:[#allocation5 + $0x10] sm:$0xff]
        %v211 = vld [vmem:[#allocation5 + $0x18] sm:$0xff]
        %v212 = vld [vmem:[#allocation5 + $0x20] sm:$0xff]
        %v213 = vld [vmem:[#allocation5 + $0x28] sm:$0xff]
        %v214 = vld [vmem:[#allocation5 + $0x30] sm:$0xff]
        %v215 = vld [vmem:[#allocation5 + $0x38] sm:$0xff]
        %v216 = vld [vmem:[#allocation5 + $0x40] sm:$0xff]
        %v217 = vld [vmem:[%s177 + $0x1] sm:$0xff]
        %v218 = vld [vmem:[%s177 + $0x9] sm:$0xff]
        %s219 = scalar_lea.vmem [#allocation5], 72
        %v220 = vld [vmem:[%s219] sm:$0xff]
        %v221 = vld [vmem:[%s219 + $0x8] sm:$0xff]
        %v222 = vld [vmem:[%s219 + $0x10] sm:$0xff]
        %v223 = vld [vmem:[%s219 + $0x18] sm:$0xff]
        %v224 = vld [vmem:[%s219 + $0x20] sm:$0xff]
        %v225 = vld [vmem:[%s219 + $0x28] sm:$0xff]
        %v226 = vld [vmem:[%s219 + $0x30] sm:$0xff]
        %v227 = vld [vmem:[%s219 + $0x38] sm:$0xff]
        %v228 = vld [vmem:[%s219 + $0x40] sm:$0xff]
        %vm229 = vcmask 588800
        %v231 = vsel %vm229, %v217, 0
        %v234 = vsel %vm229, %v218, 0
        %236 = vmatprep.subr.mxu0 0.0
        %237 = vmatpush1.msra.mxu0 %v220
        %238 = vmatprep.subr.mxu0 0.0
        %239 = vmatpush1.msra.mxu0 %v221
        %240 = vmatprep.subr.mxu0 0.0
        %241 = vmatpush1.msra.mxu0 %v222
        %242 = vmatprep.subr.mxu0 0.0
        %243 = vmatpush1.msra.mxu0 %v223
        %244 = vmatprep.subr.mxu0 0.0
        %245 = vmatpush1.msra.mxu0 %v224
        %246 = vmatprep.subr.mxu0 0.0
        %247 = vmatpush1.msra.mxu0 %v225
        %248 = vmatprep.subr.mxu0 0.0
        %249 = vmatpush1.msra.mxu0 %v226
        %250 = vmatprep.subr.mxu0 0.0
        %251 = vmatpush1.msra.mxu0 %v227
        %252 = vmatprep.subr.mxu0 0.0
        %253 = vmatpush1.msra.mxu0 %v228
        %254 = vmatprep.subr.mxu0 0.0
        %255 = vmatpush1.msra.mxu0 0.0
        %256 = vmatprep.subr.mxu0 0.0
        %257 = vmatpush1.msra.mxu0 0.0
        %258 = vmatprep.subr.mxu0 0.0
        %259 = vmatpush1.msra.mxu0 0.0
        %260 = vmatprep.subr.mxu0 0.0
        %261 = vmatpush1.msra.mxu0 0.0
        %262 = vmatprep.subr.mxu0 0.0
        %263 = vmatpush1.msra.mxu0 0.0
        %264 = vmatprep.subr.mxu0 0.0
        %265 = vmatpush1.msra.mxu0 0.0
        %266 = vmatprep.subr.mxu0 0.0
        %267 = vmatpush1.msra.mxu0 0.0
        %268 = vmatprep.subr.mxu0 0.0
        %269 = vmatpush1.msra.mxu0 0.0
        %270 = vmatprep.subr.mxu0 0.0
        %271 = vmatpush1.msra.mxu0 0.0
        %272 = vmatprep.subr.mxu0 0.0
        %273 = vmatpush1.msra.mxu0 0.0
        %274 = vmatprep.subr.mxu0 0.0
        %275 = vmatpush1.msra.mxu0 0.0
        %276 = vmatprep.subr.mxu0 0.0
        %277 = vmatpush1.msra.mxu0 0.0
        %278 = vmatprep.subr.mxu0 0.0
        %279 = vmatpush1.msra.mxu0 0.0
        %280 = vmatprep.subr.mxu0 0.0
        %281 = vmatpush1.msra.mxu0 0.0
        %282 = vmatprep.subr.mxu0 0.0
        %283 = vmatpush1.msra.mxu0 0.0
        %284 = vmatprep.subr.mxu0 0.0
        %285 = vmatpush1.msra.mxu0 0.0
        %286 = vmatprep.subr.mxu0 0.0
        %287 = vmatpush1.msra.mxu0 0.0
        %288 = vmatprep.subr.mxu0 0.0
        %289 = vmatpush1.msra.mxu0 0.0
        %290 = vmatprep.subr.mxu0 0.0
        %291 = vmatpush1.msra.mxu0 0.0
        %292 = vmatprep.subr.mxu0 0.0
        %293 = vmatpush1.msra.mxu0 0.0
        %294 = vmatprep.subr.mxu0 0.0
        %295 = vmatpush1.msra.mxu0 0.0
        %296 = vmatprep.subr.mxu0 0.0
        %297 = vmatpush1.msra.mxu0 0.0
        %298 = vmatprep.subr.mxu0 0.0
        %299 = vmatpush1.msra.mxu0 0.0
        %300 = vmatprep.mubr.f32.mxu0 0.0
        %301 = vmatmul.mubr.f32.gmra.mrb[0].mxu0 %v231
        %v302 = vpop.f32.mrb[0].mxu0
        %v303 = vadd.f32 0.0, %v302
        %v304 = vpop.f32.mrb[0].mxu0
        %305 = vmatprep.mubr.f32.mxu0 0.0
        %306 = vmatmul.mubr.f32.gmra.mrb[0].mxu0 %v234
        %v307 = vpop.f32.mrb[0].mxu0
        %v308 = vadd.f32 0.0, %v307
        %v309 = vpop.f32.mrb[0].mxu0
        %310 = vdwg.mxu0
        %v312 = vsel %vm229, %v206, 0
        %v315 = vsel %vm229, %v207, 0
        %317 = vmatprep.subr.mxu0 0.0
        %318 = vmatpush1.msra.mxu0 %v208
        %319 = vmatprep.subr.mxu0 0.0
        %320 = vmatpush1.msra.mxu0 %v209
        %321 = vmatprep.subr.mxu0 0.0
        %322 = vmatpush1.msra.mxu0 %v210
        %323 = vmatprep.subr.mxu0 0.0
        %324 = vmatpush1.msra.mxu0 %v211
        %325 = vmatprep.subr.mxu0 0.0
        %326 = vmatpush1.msra.mxu0 %v212
        %327 = vmatprep.subr.mxu0 0.0
        %328 = vmatpush1.msra.mxu0 %v213
        %329 = vmatprep.subr.mxu0 0.0
        %330 = vmatpush1.msra.mxu0 %v214
        %331 = vmatprep.subr.mxu0 0.0
        %332 = vmatpush1.msra.mxu0 %v215
        %333 = vmatprep.subr.mxu0 0.0
        %334 = vmatpush1.msra.mxu0 %v216
        %335 = vmatprep.subr.mxu0 0.0
        %336 = vmatpush1.msra.mxu0 0.0
        %337 = vmatprep.subr.mxu0 0.0
        %338 = vmatpush1.msra.mxu0 0.0
        %339 = vmatprep.subr.mxu0 0.0
        %340 = vmatpush1.msra.mxu0 0.0
        %341 = vmatprep.subr.mxu0 0.0
        %342 = vmatpush1.msra.mxu0 0.0
        %343 = vmatprep.subr.mxu0 0.0
        %344 = vmatpush1.msra.mxu0 0.0
        %345 = vmatprep.subr.mxu0 0.0
        %346 = vmatpush1.msra.mxu0 0.0
        %347 = vmatprep.subr.mxu0 0.0
        %348 = vmatpush1.msra.mxu0 0.0
        %349 = vmatprep.subr.mxu0 0.0
        %350 = vmatpush1.msra.mxu0 0.0
        %351 = vmatprep.subr.mxu0 0.0
        %352 = vmatpush1.msra.mxu0 0.0
        %353 = vmatprep.subr.mxu0 0.0
        %354 = vmatpush1.msra.mxu0 0.0
        %355 = vmatprep.subr.mxu0 0.0
        %356 = vmatpush1.msra.mxu0 0.0
        %357 = vmatprep.subr.mxu0 0.0
        %358 = vmatpush1.msra.mxu0 0.0
        %359 = vmatprep.subr.mxu0 0.0
        %360 = vmatpush1.msra.mxu0 0.0
        %361 = vmatprep.subr.mxu0 0.0
        %362 = vmatpush1.msra.mxu0 0.0
        %363 = vmatprep.subr.mxu0 0.0
        %364 = vmatpush1.msra.mxu0 0.0
        %365 = vmatprep.subr.mxu0 0.0
        %366 = vmatpush1.msra.mxu0 0.0
        %367 = vmatprep.subr.mxu0 0.0
        %368 = vmatpush1.msra.mxu0 0.0
        %369 = vmatprep.subr.mxu0 0.0
        %370 = vmatpush1.msra.mxu0 0.0
        %371 = vmatprep.subr.mxu0 0.0
        %372 = vmatpush1.msra.mxu0 0.0
        %373 = vmatprep.subr.mxu0 0.0
        %374 = vmatpush1.msra.mxu0 0.0
        %375 = vmatprep.subr.mxu0 0.0
        %376 = vmatpush1.msra.mxu0 0.0
        %377 = vmatprep.subr.mxu0 0.0
        %378 = vmatpush1.msra.mxu0 0.0
        %379 = vmatprep.subr.mxu0 0.0
        %380 = vmatpush1.msra.mxu0 0.0
        %381 = vmatprep.mubr.f32.mxu0 0.0
        %382 = vmatmul.mubr.f32.gmra.mrb[0].mxu0 %v312
        %v383 = vpop.f32.mrb[0].mxu0
        %v384 = vadd.f32 %v303, %v383
        %v385 = vpop.f32.mrb[0].mxu0
        %386 = vmatprep.mubr.f32.mxu0 0.0
        %387 = vmatmul.mubr.f32.gmra.mrb[0].mxu0 %v315
        %v388 = vpop.f32.mrb[0].mxu0
        %v389 = vadd.f32 %v308, %v388
        %v390 = vpop.f32.mrb[0].mxu0
        %391 = vdwg.mxu0
        %v392 = vld [vmem:[%s177 + $0x2] sm:$0xff]
        %v393 = vld [vmem:[%s177 + $0xa] sm:$0xff]
        %s394 = scalar_lea.vmem [#allocation5], 144
        %v395 = vld [vmem:[%s394] sm:$0xff]
        %v396 = vld [vmem:[%s394 + $0x8] sm:$0xff]
        %v397 = vld [vmem:[%s394 + $0x10] sm:$0xff]
        %v398 = vld [vmem:[%s394 + $0x18] sm:$0xff]
        %v399 = vld [vmem:[%s394 + $0x20] sm:$0xff]
        %v400 = vld [vmem:[%s394 + $0x28] sm:$0xff]
        %v401 = vld [vmem:[%s394 + $0x30] sm:$0xff]
        %v402 = vld [vmem:[%s394 + $0x38] sm:$0xff]
        %v403 = vld [vmem:[%s394 + $0x40] sm:$0xff]
        %v405 = vsel %vm229, %v392, 0
        %v408 = vsel %vm229, %v393, 0
        %410 = vmatprep.subr.mxu0 0.0
        %411 = vmatpush1.msra.mxu0 %v395
        %412 = vmatprep.subr.mxu0 0.0
        %413 = vmatpush1.msra.mxu0 %v396
        %414 = vmatprep.subr.mxu0 0.0
        %415 = vmatpush1.msra.mxu0 %v397
        %416 = vmatprep.subr.mxu0 0.0
        %417 = vmatpush1.msra.mxu0 %v398
        %418 = vmatprep.subr.mxu0 0.0
        %419 = vmatpush1.msra.mxu0 %v399
        %420 = vmatprep.subr.mxu0 0.0
        %421 = vmatpush1.msra.mxu0 %v400
        %422 = vmatprep.subr.mxu0 0.0
        %423 = vmatpush1.msra.mxu0 %v401
        %424 = vmatprep.subr.mxu0 0.0
        %425 = vmatpush1.msra.mxu0 %v402
        %426 = vmatprep.subr.mxu0 0.0
        %427 = vmatpush1.msra.mxu0 %v403
        %428 = vmatprep.subr.mxu0 0.0
        %429 = vmatpush1.msra.mxu0 0.0
        %430 = vmatprep.subr.mxu0 0.0
        %431 = vmatpush1.msra.mxu0 0.0
        %432 = vmatprep.subr.mxu0 0.0
        %433 = vmatpush1.msra.mxu0 0.0
        %434 = vmatprep.subr.mxu0 0.0
        %435 = vmatpush1.msra.mxu0 0.0
        %436 = vmatprep.subr.mxu0 0.0
        %437 = vmatpush1.msra.mxu0 0.0
        %438 = vmatprep.subr.mxu0 0.0
        %439 = vmatpush1.msra.mxu0 0.0
        %440 = vmatprep.subr.mxu0 0.0
        %441 = vmatpush1.msra.mxu0 0.0
        %442 = vmatprep.subr.mxu0 0.0
        %443 = vmatpush1.msra.mxu0 0.0
        %444 = vmatprep.subr.mxu0 0.0
        %445 = vmatpush1.msra.mxu0 0.0
        %446 = vmatprep.subr.mxu0 0.0
        %447 = vmatpush1.msra.mxu0 0.0
        %448 = vmatprep.subr.mxu0 0.0
        %449 = vmatpush1.msra.mxu0 0.0
        %450 = vmatprep.subr.mxu0 0.0
        %451 = vmatpush1.msra.mxu0 0.0
        %452 = vmatprep.subr.mxu0 0.0
        %453 = vmatpush1.msra.mxu0 0.0
        %454 = vmatprep.subr.mxu0 0.0
        %455 = vmatpush1.msra.mxu0 0.0
        %456 = vmatprep.subr.mxu0 0.0
        %457 = vmatpush1.msra.mxu0 0.0
        %458 = vmatprep.subr.mxu0 0.0
        %459 = vmatpush1.msra.mxu0 0.0
        %460 = vmatprep.subr.mxu0 0.0
        %461 = vmatpush1.msra.mxu0 0.0
        %462 = vmatprep.subr.mxu0 0.0
        %463 = vmatpush1.msra.mxu0 0.0
        %464 = vmatprep.subr.mxu0 0.0
        %465 = vmatpush1.msra.mxu0 0.0
        %466 = vmatprep.subr.mxu0 0.0
        %467 = vmatpush1.msra.mxu0 0.0
        %468 = vmatprep.subr.mxu0 0.0
        %469 = vmatpush1.msra.mxu0 0.0
        %470 = vmatprep.subr.mxu0 0.0
        %471 = vmatpush1.msra.mxu0 0.0
        %472 = vmatprep.subr.mxu0 0.0
        %473 = vmatpush1.msra.mxu0 0.0
        %474 = vmatprep.mubr.f32.mxu0 0.0
        %475 = vmatmul.mubr.f32.gmra.mrb[0].mxu0 %v405
        %v476 = vpop.f32.mrb[0].mxu0
        %v477 = vadd.f32 0.0, %v476
        %v478 = vpop.f32.mrb[0].mxu0
        %479 = vmatprep.mubr.f32.mxu0 0.0
        %480 = vmatmul.mubr.f32.gmra.mrb[0].mxu0 %v408
        %v481 = vpop.f32.mrb[0].mxu0
        %v482 = vadd.f32 0.0, %v481
        %v483 = vpop.f32.mrb[0].mxu0
        %484 = vdwg.mxu0
        %v485 = vadd.f32 %v384, %v477
        %v486 = vadd.f32 %v389, %v482
        %v487 = vld [vmem:[%s2] sm:$0x1]
        %v489 = vlaneseq
        %v490 = vshrl.u32 %v489, 7
        %v491 = vsub.s32 0, %v490
        %v492 = vrot.slane %v487, %v491
        %v494 = vadd.f32 %v485, %v492
        %v495 = vadd.f32 %v486, %v492
        %496 = vst [vmem:[%s203] sm:$0xff] %v494
        %497 = vst [vmem:[%s203 + $0x8] sm:$0xff] %v495
        %s498 = sand.u32 %s97, 1
        %s499 = scalar_lea.sflag [#allocation4], %s498
        %s500 = sand.u32 %s97, 1
        %s501 = smul.addr %s500, 16
        %s502 = scalar_lea.vmem [#allocation7], %s501
        // Predicated region
        $region41: #{tpu_custom_call.1} parent=31 // pred_check
          %p503 = pneg %p107
        $region42: #{tpu_custom_call.1} parent=31 // pred_check_branch
          %505 = sbr.rel (%p503) target = $region44
        $region43: #{tpu_custom_call.1} parent=31 // pred_region
          %s506 = smul.u32 2, %s21
          %s508 = ssub.s32 256, 256
          %509 = vsyncadd %s499, %s508
          %s510 = smul.addr %s506, 128
          %s511 = scalar_lea.hbm %s3, %s510
          %s512 = sshll.u32 %s502, 4
          %s513 = int_to_ptr.vmem [resolvable:$true] %s512
          %518 = dma.vmem_to_hbm [thread:$0]  %s513, 256, %s511, %s499, 128, 128, 8
        $region44: #{tpu_custom_call.1} parent=31 // pred_fallthru
          _
      $region32: #{tpu_custom_call.1} parent=5 // pred_fallthru
        _
      %p519 = scmp.le.s32.totalorder 2, %s16
      // Predicated region
      $region45: #{tpu_custom_call.1} parent=5 // pred_check
        %p520 = pneg %p519
      $region46: #{tpu_custom_call.1} parent=5 // pred_check_branch
        %522 = sbr.rel (%p520) target = $region48
      $region47: #{tpu_custom_call.1} parent=5 // pred_region
        %s523 = ssub.s32 %s16, 2
        // Predicated region
        $region49: #{tpu_custom_call.1} parent=47 // pred_check
          %p524 = pneg %p113
        $region50: #{tpu_custom_call.1} parent=47 // pred_check_branch
          %526 = sbr.rel (%p524) target = $region52
        $region51: #{tpu_custom_call.1} parent=47 // pred_region
          %s527 = sand.u32 %s98, 1
          %s528 = scalar_lea.sflag [#allocation4], %s527
          %s529 = sand.u32 %s98, 1
          %s530 = smul.addr %s529, 16
          %s531 = scalar_lea.vmem [#allocation7], %s530
          %532 = dma.done %s528, 256
        $region52: #{tpu_custom_call.1} parent=47 // pred_fallthru
          _
      $region48: #{tpu_custom_call.1} parent=5 // pred_fallthru
        _
    $region6: #{tpu_custom_call.1} parent=1 // loop_footer
      %s20 = sadd.s32 1, %s16
    $region7: #{tpu_custom_call.1} parent=1 // loop_footer_branch
      %15 = sbr.rel target = $region3
    $region8: #{tpu_custom_call.1} parent=1 // loop_exit
      _
    %533 = vsyncpa [#allocation3], 1
    %s534 = scalar_lea.sflag [#allocation3], 1
    %535 = vsyncpa %s534, 1
    %536 = vsyncpa [#allocation6], 1
    %537 = vsyncpa [#allocation4], 1
    %s538 = scalar_lea.sflag [#allocation4], 1
    %539 = vsyncpa %s538, 1

</llo_original>
